<compile_context>
chip_gen: v6e
topology: v6e:2x2x1
jax: 0.10.0
libtpu: 0.0.40
codegen_flags: <defaults>
</compile_context>

<pallas_src>
import jax
import jax.numpy as jnp
from jax.experimental import pallas as pl
from jax.experimental.pallas import tpu as pltpu

IN_DIM_RAW = 1
IN_DIM = IN_DIM_RAW + 1          # module does in_dim = in_dim + 1
OUT_DIM = 1
HDIM = 20
P_DROP = 0.01

LANE = 128
SUBLANE = 8
TILE_B_MAX = 1024                # batch rows per grid step

# Drop if top-24 hash bits < threshold (rounded, not truncated).
_DROP_THRESH_24 = int(round(P_DROP * (1 << 24)))


def _round_up(n, m):
    return ((n + m - 1) // m) * m


def _pad2(a, rows, cols, dtype=jnp.float32):
    out = jnp.zeros((rows, cols), dtype)
    return out.at[: a.shape[0], : a.shape[1]].set(a.astype(dtype))


def _hash_keep(idx_u32, salt_u32):
    """Counter-based PRNG (murmur3 fmix32 finalizer). Returns bool keep-mask."""
    h = idx_u32 * jnp.uint32(0x9E3779B1) + salt_u32
    h = h ^ (h >> 16)
    h = h * jnp.uint32(0x85EBCA6B)
    h = h ^ (h >> 13)
    h = h * jnp.uint32(0xC2B2AE35)
    h = h ^ (h >> 16)
    r = (h >> 8).astype(jnp.int32)          # uniform in [0, 2^24)
    return r >= _DROP_THRESH_24


def _mlp_kernel(seed_ref, x_ref, w1_ref, b1_ref, w2_ref, b2_ref,
                w3_ref, b3_ref, w4_ref, b4_ref, o_ref):
    tile_b = x_ref.shape[0]
    pid = pl.program_id(0)

    # Unique index per (global row, lane) -> distinct dropout masks per batch tile.
    row = jax.lax.broadcasted_iota(jnp.int32, (tile_b, LANE), 0)
    col = jax.lax.broadcasted_iota(jnp.int32, (tile_b, LANE), 1)
    elem = ((pid * tile_b + row) * LANE + col).astype(jnp.uint32)
    seed_u = seed_ref[0].astype(jnp.uint32)

    def dropout(h, layer):
        salt = seed_u * jnp.uint32(0x9E3779B9) + \
            jnp.uint32((layer * 0x7F4A7C15) & 0xFFFFFFFF)
        keep = _hash_keep(elem, salt)
        # 1/(1-p) inverted-dropout scale is pre-folded into w2/w3/w4.
        return jnp.where(keep, h, 0.0)

    # ---- layer 1: (tile_b, IN_DIM) x (IN_DIM, HDIM) as broadcasted outer
    # products on the VPU (x is kept narrow in HBM, no 128-lane padding).
    h = x_ref[:, 0:1] * w1_ref[0:1, :]
    for c in range(1, IN_DIM):
        h = h + x_ref[:, c:c + 1] * w1_ref[c:c + 1, :]
    h = dropout(jnp.tanh(h + b1_ref[...]), 1)

    # ---- layers 2 & 3: 128x128 MXU matmuls, bf16 operands, f32 accumulation.
    h = jnp.dot(h.astype(jnp.bfloat16), w2_ref[...],
                preferred_element_type=jnp.float32) + b2_ref[...]
    h = dropout(jnp.tanh(h), 2)

    h = jnp.dot(h.astype(jnp.bfloat16), w3_ref[...],
                preferred_element_type=jnp.float32) + b3_ref[...]
    h = dropout(jnp.tanh(h), 3)

    # ---- layer 4: out_dim == 1 -> VPU multiply + lane reduction; output stays
    # one lane wide so HBM writeback is 4 B/row.
    out = jnp.sum(h * w4_ref[...], axis=-1, keepdims=True) + b4_ref[...]
    o_ref[...] = out.astype(o_ref.dtype)


def init_params(key):
    """Xavier-uniform weights (stored (fan_in, fan_out)), zero biases — matches the
    module's init_weights (xavier_uniform_ + bias.fill_(0))."""
    def xavier(k, fan_in, fan_out):
        a = (6.0 / (fan_in + fan_out)) ** 0.5
        return jax.random.uniform(k, (fan_in, fan_out), jnp.float32, -a, a)

    k1, k2, k3, k4 = jax.random.split(key, 4)
    return (
        (xavier(k1, IN_DIM, HDIM), jnp.zeros((HDIM,), jnp.float32)),
        (xavier(k2, HDIM, HDIM), jnp.zeros((HDIM,), jnp.float32)),
        (xavier(k3, HDIM, HDIM), jnp.zeros((HDIM,), jnp.float32)),
        (xavier(k4, HDIM, OUT_DIM), jnp.zeros((OUT_DIM,), jnp.float32)),
    )


def prepare_params(params):
    """Pad / transpose / scale parameters ONCE (hoisted out of the forward path)."""
    (w1, b1), (w2, b2), (w3, b3), (w4, b4) = params
    inv_keep = 1.0 / (1.0 - P_DROP)   # fold inverted-dropout scale into the weights
    w2 = w2 * inv_keep                # that consume dropped activations
    w3 = w3 * inv_keep
    w4 = w4 * inv_keep

    w1p = _pad2(w1, IN_DIM, LANE)                       # (2, 128)   f32
    b1p = _pad2(b1.reshape(1, -1), 1, LANE)             # (1, 128)   f32
    w2p = _pad2(w2, LANE, LANE, jnp.bfloat16)           # (128, 128) bf16
    b2p = _pad2(b2.reshape(1, -1), 1, LANE)             # (1, 128)   f32
    w3p = _pad2(w3, LANE, LANE, jnp.bfloat16)           # (128, 128) bf16
    b3p = _pad2(b3.reshape(1, -1), 1, LANE)             # (1, 128)   f32
    w4p = _pad2(w4.T, 1, LANE)                          # (1, 128)   f32 row vector
    b4p = jnp.asarray(b4, jnp.float32).reshape(1, 1)    # (1, 1)     f32
    return (w1p, b1p, w2p, b2p, w3p, b3p, w4p, b4p)


def mlp_mcdrop_forward(x, prepared, seed):
    """x: (batch, IN_DIM) float32 -> (batch, OUT_DIM) float32 (dropout active)."""
    n = x.shape[0]
    tile_b = min(TILE_B_MAX, _round_up(n, SUBLANE))
    n_pad = _round_up(n, tile_b)
    grid = (n_pad // tile_b,)

    xp = jnp.zeros((n_pad, IN_DIM), jnp.float32).at[:n, :].set(
        x.astype(jnp.float32))
    seed_arr = jnp.asarray([seed], dtype=jnp.int32)

    const = lambda i: (0, 0)        # weights / biases resident across batch tiles
    out_padded = pl.pallas_call(
        _mlp_kernel,
        out_shape=jax.ShapeDtypeStruct((n_pad, OUT_DIM), jnp.float32),
        grid=grid,
        in_specs=[
            pl.BlockSpec(memory_space=pltpu.MemorySpace.SMEM),   # seed (scalar)
            pl.BlockSpec((tile_b, IN_DIM), lambda i: (i, 0)),    # x (narrow)
            pl.BlockSpec((IN_DIM, LANE), const),                 # w1
            pl.BlockSpec((1, LANE), const),                      # b1
            pl.BlockSpec((LANE, LANE), const),                   # w2 (bf16)
            pl.BlockSpec((1, LANE), const),                      # b2
            pl.BlockSpec((LANE, LANE), const),                   # w3 (bf16)
            pl.BlockSpec((1, LANE), const),                      # b3
            pl.BlockSpec((1, LANE), const),                      # w4 row
            pl.BlockSpec((1, 1), const),                         # b4
        ],
        out_specs=pl.BlockSpec((tile_b, OUT_DIM), lambda i: (i, 0)),
        compiler_params=pltpu.CompilerParams(
            dimension_semantics=("parallel",)),
    )(seed_arr, xp, *prepared)

    return out_padded[:n, :]


if __name__ == "__main__":
    key = jax.random.PRNGKey(0)
    k_param, k_x1, k_x2 = jax.random.split(key, 3)

    params = init_params(k_param)
    prepared = prepare_params(params)

    # Small deterministic example (single grid step).
    batch = 8
    x = jax.random.normal(k_x1, (batch, IN_DIM), dtype=jnp.float32)
    y = jax.block_until_ready(mlp_mcdrop_forward(x, prepared, seed=0))
    assert y.shape == (batch, OUT_DIM)
    assert bool(jnp.all(jnp.isfinite(y)))

    # Larger batch exercising the tiled, pipelined grid path (grid > 1, ragged edge).
    batch2 = 2000
    x2 = jax.random.normal(k_x2, (batch2, IN_DIM), dtype=jnp.float32)
    y2 = jax.block_until_ready(mlp_mcdrop_forward(x2, prepared, seed=1))
    assert y2.shape == (batch2, OUT_DIM)
    assert bool(jnp.all(jnp.isfinite(y2)))

    print("KERNEL_OK")
</pallas_src>

<mosaic_0001>
module attributes {stable_mosaic.version = 11 : i64} {
  func.func @_mlp_kernel(%arg0: i32, %arg1: memref<1xi32, #tpu.memory_space<smem>>, %arg2: memref<8x2xf32, #tpu.memory_space<vmem>>, %arg3: memref<2x128xf32, #tpu.memory_space<vmem>>, %arg4: memref<1x128xf32, #tpu.memory_space<vmem>>, %arg5: memref<128x128xbf16, #tpu.memory_space<vmem>>, %arg6: memref<1x128xf32, #tpu.memory_space<vmem>>, %arg7: memref<128x128xbf16, #tpu.memory_space<vmem>>, %arg8: memref<1x128xf32, #tpu.memory_space<vmem>>, %arg9: memref<1x128xf32, #tpu.memory_space<vmem>>, %arg10: memref<1x1xf32, #tpu.memory_space<vmem>>, %arg11: memref<8x1xf32, #tpu.memory_space<vmem>>) attributes {dimension_semantics = [#tpu.dimension_semantics<parallel>], iteration_bounds = array<i64: 1>, scalar_prefetch = 0 : i64, scratch_operands = 0 : i64, tpu.core_type = #tpu.core_type<tc>, window_params = [{transform_indices = @transform_0, window_bounds = array<i64: 1>}, {transform_indices = @transform_1, window_bounds = array<i64: 8, 2>}, {pipeline_mode = #tpu.pipeline_mode<synchronous>, transform_indices = @transform_2, window_bounds = array<i64: 2, 128>}, {pipeline_mode = #tpu.pipeline_mode<synchronous>, transform_indices = @transform_3, window_bounds = array<i64: 1, 128>}, {pipeline_mode = #tpu.pipeline_mode<synchronous>, transform_indices = @transform_4, window_bounds = array<i64: 128, 128>}, {pipeline_mode = #tpu.pipeline_mode<synchronous>, transform_indices = @transform_5, window_bounds = array<i64: 1, 128>}, {pipeline_mode = #tpu.pipeline_mode<synchronous>, transform_indices = @transform_6, window_bounds = array<i64: 128, 128>}, {pipeline_mode = #tpu.pipeline_mode<synchronous>, transform_indices = @transform_7, window_bounds = array<i64: 1, 128>}, {pipeline_mode = #tpu.pipeline_mode<synchronous>, transform_indices = @transform_8, window_bounds = array<i64: 1, 128>}, {pipeline_mode = #tpu.pipeline_mode<synchronous>, transform_indices = @transform_9, window_bounds = array<i64: 1, 1>}, {transform_indices = @transform_10, window_bounds = array<i64: 8, 1>}]} {
    %0 = tpu.iota {dimensions = array<i32: 0>} : vector<8x128xi32>
    %1 = tpu.iota {dimensions = array<i32: 1>} : vector<8x128xi32>
    %c8_i32 = arith.constant 8 : i32
    %2 = arith.muli %arg0, %c8_i32 : i32
    %3 = vector.broadcast %2 : i32 to vector<8x128xi32>
    %4 = arith.addi %3, %0 : vector<8x128xi32>
    %c128_i32 = arith.constant 128 : i32
    %5 = vector.broadcast %c128_i32 : i32 to vector<8x128xi32>
    %6 = arith.muli %4, %5 : vector<8x128xi32>
    %7 = arith.addi %6, %1 : vector<8x128xi32>
    %c0 = arith.constant 0 : index
    %8 = memref.load %arg1[%c0] : memref<1xi32, #tpu.memory_space<smem>>
    %c0_0 = arith.constant 0 : index
    %c0_1 = arith.constant 0 : index
    %9 = vector.load %arg2[%c0_0, %c0_1] : memref<8x2xf32, #tpu.memory_space<vmem>>, vector<8x1xf32>
    %c0_2 = arith.constant 0 : index
    %c0_3 = arith.constant 0 : index
    %10 = vector.load %arg3[%c0_2, %c0_3] : memref<2x128xf32, #tpu.memory_space<vmem>>, vector<1x128xf32>
    %11 = vector.broadcast %9 : vector<8x1xf32> to vector<8x128xf32>
    %12 = vector.broadcast %10 : vector<1x128xf32> to vector<8x128xf32>
    %13 = arith.mulf %11, %12 : vector<8x128xf32>
    %c0_4 = arith.constant 0 : index
    %c1 = arith.constant 1 : index
    %14 = vector.load %arg2[%c0_4, %c1] : memref<8x2xf32, #tpu.memory_space<vmem>>, vector<8x1xf32>
    %c1_5 = arith.constant 1 : index
    %c0_6 = arith.constant 0 : index
    %15 = vector.load %arg3[%c1_5, %c0_6] : memref<2x128xf32, #tpu.memory_space<vmem>>, vector<1x128xf32>
    %16 = vector.broadcast %14 : vector<8x1xf32> to vector<8x128xf32>
    %17 = vector.broadcast %15 : vector<1x128xf32> to vector<8x128xf32>
    %18 = arith.mulf %16, %17 : vector<8x128xf32>
    %19 = arith.addf %13, %18 : vector<8x128xf32>
    %c0_7 = arith.constant 0 : index
    %c0_8 = arith.constant 0 : index
    %20 = vector.load %arg4[%c0_7, %c0_8] : memref<1x128xf32, #tpu.memory_space<vmem>>, vector<1x128xf32>
    %21 = vector.broadcast %20 : vector<1x128xf32> to vector<8x128xf32>
    %22 = arith.addf %19, %21 : vector<8x128xf32>
    %23 = math.tanh %22 : vector<8x128xf32>
    %c-1640531527_i32 = arith.constant -1640531527 : i32
    %24 = arith.muli %8, %c-1640531527_i32 : i32
    %c2135587861_i32 = arith.constant 2135587861 : i32
    %25 = arith.addi %24, %c2135587861_i32 : i32
    %c-1640531535_i32 = arith.constant -1640531535 : i32
    %26 = vector.broadcast %c-1640531535_i32 : i32 to vector<8x128xi32>
    %27 = arith.muli %7, %26 : vector<8x128xi32>
    %28 = vector.broadcast %25 : i32 to vector<8x128xi32>
    %29 = arith.addi %27, %28 : vector<8x128xi32>
    %c16_i32 = arith.constant 16 : i32
    %30 = vector.broadcast %c16_i32 : i32 to vector<8x128xi32>
    %31 = arith.shrui %29, %30 : vector<8x128xi32>
    %32 = arith.xori %29, %31 : vector<8x128xi32>
    %c-2048144789_i32 = arith.constant -2048144789 : i32
    %33 = vector.broadcast %c-2048144789_i32 : i32 to vector<8x128xi32>
    %34 = arith.muli %32, %33 : vector<8x128xi32>
    %c13_i32 = arith.constant 13 : i32
    %35 = vector.broadcast %c13_i32 : i32 to vector<8x128xi32>
    %36 = arith.shrui %34, %35 : vector<8x128xi32>
    %37 = arith.xori %34, %36 : vector<8x128xi32>
    %c-1028477387_i32 = arith.constant -1028477387 : i32
    %38 = vector.broadcast %c-1028477387_i32 : i32 to vector<8x128xi32>
    %39 = arith.muli %37, %38 : vector<8x128xi32>
    %c16_i32_9 = arith.constant 16 : i32
    %40 = vector.broadcast %c16_i32_9 : i32 to vector<8x128xi32>
    %41 = arith.shrui %39, %40 : vector<8x128xi32>
    %42 = arith.xori %39, %41 : vector<8x128xi32>
    %c8_i32_10 = arith.constant 8 : i32
    %43 = vector.broadcast %c8_i32_10 : i32 to vector<8x128xi32>
    %44 = arith.shrui %42, %43 : vector<8x128xi32>
    %c167772_i32 = arith.constant 167772 : i32
    %45 = vector.broadcast %c167772_i32 : i32 to vector<8x128xi32>
    %46 = arith.cmpi sge, %44, %45 : vector<8x128xi32>
    %cst = arith.constant 0.000000e+00 : f32
    %47 = vector.broadcast %cst : f32 to vector<8x128xf32>
    %48 = arith.select %46, %23, %47 : vector<8x128xi1>, vector<8x128xf32>
    %49 = arith.truncf %48 : vector<8x128xf32> to vector<8x128xbf16>
    %c0_11 = arith.constant 0 : index
    %c0_12 = arith.constant 0 : index
    %50 = vector.load %arg5[%c0_11, %c0_12] : memref<128x128xbf16, #tpu.memory_space<vmem>>, vector<128x128xbf16>
    %cst_13 = arith.constant dense<0.000000e+00> : vector<8x128xf32>
    %51 = tpu.matmul %49, %50, %cst_13 {dimension_numbers = #tpu.dot_dimension_numbers<[1], [0], [0], [1], [0, 0, 1, 1], [], []>} : vector<8x128xbf16>, vector<128x128xbf16>, vector<8x128xf32> -> vector<8x128xf32>
    %c0_14 = arith.constant 0 : index
    %c0_15 = arith.constant 0 : index
    %52 = vector.load %arg6[%c0_14, %c0_15] : memref<1x128xf32, #tpu.memory_space<vmem>>, vector<1x128xf32>
    %53 = vector.broadcast %52 : vector<1x128xf32> to vector<8x128xf32>
    %54 = arith.addf %51, %53 : vector<8x128xf32>
    %55 = math.tanh %54 : vector<8x128xf32>
    %c-1640531527_i32_16 = arith.constant -1640531527 : i32
    %56 = arith.muli %8, %c-1640531527_i32_16 : i32
    %c-23791574_i32 = arith.constant -23791574 : i32
    %57 = arith.addi %56, %c-23791574_i32 : i32
    %c-1640531535_i32_17 = arith.constant -1640531535 : i32
    %58 = vector.broadcast %c-1640531535_i32_17 : i32 to vector<8x128xi32>
    %59 = arith.muli %7, %58 : vector<8x128xi32>
    %60 = vector.broadcast %57 : i32 to vector<8x128xi32>
    %61 = arith.addi %59, %60 : vector<8x128xi32>
    %c16_i32_18 = arith.constant 16 : i32
    %62 = vector.broadcast %c16_i32_18 : i32 to vector<8x128xi32>
    %63 = arith.shrui %61, %62 : vector<8x128xi32>
    %64 = arith.xori %61, %63 : vector<8x128xi32>
    %c-2048144789_i32_19 = arith.constant -2048144789 : i32
    %65 = vector.broadcast %c-2048144789_i32_19 : i32 to vector<8x128xi32>
    %66 = arith.muli %64, %65 : vector<8x128xi32>
    %c13_i32_20 = arith.constant 13 : i32
    %67 = vector.broadcast %c13_i32_20 : i32 to vector<8x128xi32>
    %68 = arith.shrui %66, %67 : vector<8x128xi32>
    %69 = arith.xori %66, %68 : vector<8x128xi32>
    %c-1028477387_i32_21 = arith.constant -1028477387 : i32
    %70 = vector.broadcast %c-1028477387_i32_21 : i32 to vector<8x128xi32>
    %71 = arith.muli %69, %70 : vector<8x128xi32>
    %c16_i32_22 = arith.constant 16 : i32
    %72 = vector.broadcast %c16_i32_22 : i32 to vector<8x128xi32>
    %73 = arith.shrui %71, %72 : vector<8x128xi32>
    %74 = arith.xori %71, %73 : vector<8x128xi32>
    %c8_i32_23 = arith.constant 8 : i32
    %75 = vector.broadcast %c8_i32_23 : i32 to vector<8x128xi32>
    %76 = arith.shrui %74, %75 : vector<8x128xi32>
    %c167772_i32_24 = arith.constant 167772 : i32
    %77 = vector.broadcast %c167772_i32_24 : i32 to vector<8x128xi32>
    %78 = arith.cmpi sge, %76, %77 : vector<8x128xi32>
    %cst_25 = arith.constant 0.000000e+00 : f32
    %79 = vector.broadcast %cst_25 : f32 to vector<8x128xf32>
    %80 = arith.select %78, %55, %79 : vector<8x128xi1>, vector<8x128xf32>
    %81 = arith.truncf %80 : vector<8x128xf32> to vector<8x128xbf16>
    %c0_26 = arith.constant 0 : index
    %c0_27 = arith.constant 0 : index
    %82 = vector.load %arg7[%c0_26, %c0_27] : memref<128x128xbf16, #tpu.memory_space<vmem>>, vector<128x128xbf16>
    %cst_28 = arith.constant dense<0.000000e+00> : vector<8x128xf32>
    %83 = tpu.matmul %81, %82, %cst_28 {dimension_numbers = #tpu.dot_dimension_numbers<[1], [0], [0], [1], [0, 0, 1, 1], [], []>} : vector<8x128xbf16>, vector<128x128xbf16>, vector<8x128xf32> -> vector<8x128xf32>
    %c0_29 = arith.constant 0 : index
    %c0_30 = arith.constant 0 : index
    %84 = vector.load %arg8[%c0_29, %c0_30] : memref<1x128xf32, #tpu.memory_space<vmem>>, vector<1x128xf32>
    %85 = vector.broadcast %84 : vector<1x128xf32> to vector<8x128xf32>
    %86 = arith.addf %83, %85 : vector<8x128xf32>
    %87 = math.tanh %86 : vector<8x128xf32>
    %c-1640531527_i32_31 = arith.constant -1640531527 : i32
    %88 = arith.muli %8, %c-1640531527_i32_31 : i32
    %c2111796287_i32 = arith.constant 2111796287 : i32
    %89 = arith.addi %88, %c2111796287_i32 : i32
    %c-1640531535_i32_32 = arith.constant -1640531535 : i32
    %90 = vector.broadcast %c-1640531535_i32_32 : i32 to vector<8x128xi32>
    %91 = arith.muli %7, %90 : vector<8x128xi32>
    %92 = vector.broadcast %89 : i32 to vector<8x128xi32>
    %93 = arith.addi %91, %92 : vector<8x128xi32>
    %c16_i32_33 = arith.constant 16 : i32
    %94 = vector.broadcast %c16_i32_33 : i32 to vector<8x128xi32>
    %95 = arith.shrui %93, %94 : vector<8x128xi32>
    %96 = arith.xori %93, %95 : vector<8x128xi32>
    %c-2048144789_i32_34 = arith.constant -2048144789 : i32
    %97 = vector.broadcast %c-2048144789_i32_34 : i32 to vector<8x128xi32>
    %98 = arith.muli %96, %97 : vector<8x128xi32>
    %c13_i32_35 = arith.constant 13 : i32
    %99 = vector.broadcast %c13_i32_35 : i32 to vector<8x128xi32>
    %100 = arith.shrui %98, %99 : vector<8x128xi32>
    %101 = arith.xori %98, %100 : vector<8x128xi32>
    %c-1028477387_i32_36 = arith.constant -1028477387 : i32
    %102 = vector.broadcast %c-1028477387_i32_36 : i32 to vector<8x128xi32>
    %103 = arith.muli %101, %102 : vector<8x128xi32>
    %c16_i32_37 = arith.constant 16 : i32
    %104 = vector.broadcast %c16_i32_37 : i32 to vector<8x128xi32>
    %105 = arith.shrui %103, %104 : vector<8x128xi32>
    %106 = arith.xori %103, %105 : vector<8x128xi32>
    %c8_i32_38 = arith.constant 8 : i32
    %107 = vector.broadcast %c8_i32_38 : i32 to vector<8x128xi32>
    %108 = arith.shrui %106, %107 : vector<8x128xi32>
    %c167772_i32_39 = arith.constant 167772 : i32
    %109 = vector.broadcast %c167772_i32_39 : i32 to vector<8x128xi32>
    %110 = arith.cmpi sge, %108, %109 : vector<8x128xi32>
    %cst_40 = arith.constant 0.000000e+00 : f32
    %111 = vector.broadcast %cst_40 : f32 to vector<8x128xf32>
    %112 = arith.select %110, %87, %111 : vector<8x128xi1>, vector<8x128xf32>
    %c0_41 = arith.constant 0 : index
    %c0_42 = arith.constant 0 : index
    %113 = vector.load %arg9[%c0_41, %c0_42] : memref<1x128xf32, #tpu.memory_space<vmem>>, vector<1x128xf32>
    %114 = vector.broadcast %113 : vector<1x128xf32> to vector<8x128xf32>
    %115 = arith.mulf %112, %114 : vector<8x128xf32>
    %cst_43 = arith.constant dense<0.000000e+00> : vector<8xf32>
    %116 = vector.multi_reduction <add>, %115, %cst_43 [1] : vector<8x128xf32> to vector<8xf32>
    %117 = vector.shape_cast %116 : vector<8xf32> to vector<8x1xf32>
    %c0_44 = arith.constant 0 : index
    %c0_45 = arith.constant 0 : index
    %118 = vector.load %arg10[%c0_44, %c0_45] : memref<1x1xf32, #tpu.memory_space<vmem>>, vector<1x1xf32>
    %119 = vector.broadcast %118 : vector<1x1xf32> to vector<8x1xf32>
    %120 = arith.addf %117, %119 : vector<8x1xf32>
    %c0_46 = arith.constant 0 : index
    %c0_47 = arith.constant 0 : index
    %121 = vector.load %arg11[%c0_46, %c0_47] : memref<8x1xf32, #tpu.memory_space<vmem>>, vector<8x1xf32>
    tpu.vector_store %arg11[%c0_46, %c0_47], %120 {strides = array<i32>} : memref<8x1xf32, #tpu.memory_space<vmem>>, vector<8x1xf32>,
    return
  }
  func.func @transform_0(%arg0: i32) -> i32 {
    %c0_i32 = arith.constant 0 : i32
    %c0_i32_0 = arith.constant 0 : i32
    return %c0_i32 : i32
  }
  func.func @transform_1(%arg0: i32) -> (i32, i32) {
    %c0_i32 = arith.constant 0 : i32
    %c0_i32_0 = arith.constant 0 : i32
    return %arg0, %c0_i32 : i32, i32
  }
  func.func @transform_2(%arg0: i32) -> (i32, i32) {
    %c0_i32 = arith.constant 0 : i32
    %c0_i32_0 = arith.constant 0 : i32
    %c0_i32_1 = arith.constant 0 : i32
    return %c0_i32, %c0_i32_0 : i32, i32
  }
  func.func @transform_3(%arg0: i32) -> (i32, i32) {
    %c0_i32 = arith.constant 0 : i32
    %c0_i32_0 = arith.constant 0 : i32
    %c0_i32_1 = arith.constant 0 : i32
    return %c0_i32, %c0_i32_0 : i32, i32
  }
  func.func @transform_4(%arg0: i32) -> (i32, i32) {
    %c0_i32 = arith.constant 0 : i32
    %c0_i32_0 = arith.constant 0 : i32
    %c0_i32_1 = arith.constant 0 : i32
    return %c0_i32, %c0_i32_0 : i32, i32
  }
  func.func @transform_5(%arg0: i32) -> (i32, i32) {
    %c0_i32 = arith.constant 0 : i32
    %c0_i32_0 = arith.constant 0 : i32
    %c0_i32_1 = arith.constant 0 : i32
    return %c0_i32, %c0_i32_0 : i32, i32
  }
  func.func @transform_6(%arg0: i32) -> (i32, i32) {
    %c0_i32 = arith.constant 0 : i32
    %c0_i32_0 = arith.constant 0 : i32
    %c0_i32_1 = arith.constant 0 : i32
    return %c0_i32, %c0_i32_0 : i32, i32
  }
  func.func @transform_7(%arg0: i32) -> (i32, i32) {
    %c0_i32 = arith.constant 0 : i32
    %c0_i32_0 = arith.constant 0 : i32
    %c0_i32_1 = arith.constant 0 : i32
    return %c0_i32, %c0_i32_0 : i32, i32
  }
  func.func @transform_8(%arg0: i32) -> (i32, i32) {
    %c0_i32 = arith.constant 0 : i32
    %c0_i32_0 = arith.constant 0 : i32
    %c0_i32_1 = arith.constant 0 : i32
    return %c0_i32, %c0_i32_0 : i32, i32
  }
  func.func @transform_9(%arg0: i32) -> (i32, i32) {
    %c0_i32 = arith.constant 0 : i32
    %c0_i32_0 = arith.constant 0 : i32
    %c0_i32_1 = arith.constant 0 : i32
    return %c0_i32, %c0_i32_0 : i32, i32
  }
  func.func @transform_10(%arg0: i32) -> (i32, i32) {
    %c0_i32 = arith.constant 0 : i32
    %c0_i32_0 = arith.constant 0 : i32
    return %arg0, %c0_i32 : i32, i32
  }
}

</mosaic_0001>

<llo_original>
// kernel: tpu_custom_call.1
$region0: #{tpu_custom_call.1}
  #allocation0 [shape = 'u32[]', space=smem, size = 0x4, offset = 0x4, fixed_abs, tag = 'smem constant byte address 0x4 - core index']
  #allocation1 [shape = 'u32[144,128]{1,0:T(1,128)}', space=vmem, size = 0x12000, scoped, tag = 'internal scratch']
  #allocation2 [shape = 's32[1]{0:T(128)S(6)}', space=smem, size = 0x200, scoped, tag = 'scoped memory for tpu_custom_call.1']
  #allocation3 [shape = 'f32[1,1]{1,0:T(1,128)S(1)}', space=vmem, size = 0x200, scoped, tag = 'scoped memory for tpu_custom_call.1']
  %s0 = inlined_call_operand.<no memory space> [shape: s32[1], index: 0, kind: input, shape index: {}]
  %s1 = inlined_call_operand.vmem [shape: f32[8,2], index: 1, kind: input, shape index: {}]
  %s2 = inlined_call_operand.vmem [shape: f32[2,128], index: 2, kind: input, shape index: {}]
  %s3 = inlined_call_operand.vmem [shape: f32[1,128], index: 3, kind: input, shape index: {}]
  %s4 = inlined_call_operand.hbm [shape: bf16[128,128], index: 4, kind: input, shape index: {}]
  %s5 = inlined_call_operand.vmem [shape: f32[1,128], index: 5, kind: input, shape index: {}]
  %s6 = inlined_call_operand.hbm [shape: bf16[128,128], index: 6, kind: input, shape index: {}]
  %s7 = inlined_call_operand.vmem [shape: f32[1,128], index: 7, kind: input, shape index: {}]
  %s8 = inlined_call_operand.vmem [shape: f32[1,128], index: 8, kind: input, shape index: {}]
  %s9 = inlined_call_operand.<no memory space> [shape: f32[1,1], index: 9, kind: input, shape index: {}]
  %s10 = inlined_call_operand.vmem [shape: f32[8,1], index: 10, kind: output, shape index: {}]
  %s11 = sld [smem:[#allocation0]]
  $region58: #{tpu_custom_call.1} parent=0
    _
  %s13 = ssub.s32 1, %s11
  %s14 = scalar_select 0, %s13, %s11
  %15 = sst [smem:[#allocation2]] %s0
  %v16 = vstv %s9
  %17 = vst [vmem:[#allocation3] sm:$0x1] %v16
  $region1: #{tpu_custom_call.1} parent=0
    #allocation4 [shape = 'u8[32768]{0}', space=vmem, size = 0x8000, scoped, tag = 'input window, operand 4, single buffered']
    #allocation5 [shape = 's32[1]{0}', space=sflag, size = 0x4, scoped, tag = 'scoped memory for tpu_custom_call.1']
    #allocation6 [shape = 'u8[32768]{0}', space=vmem, size = 0x8000, scoped, tag = 'input window, operand 6, single buffered']
    #allocation7 [shape = 's32[1]{0}', space=sflag, size = 0x4, scoped, tag = 'scoped memory for tpu_custom_call.1']
    %18 = vsyncpa [#allocation5], 0
    %19 = vsyncpa [#allocation7], 0
    // Predicated region
    $region2: #{tpu_custom_call.1} parent=1 // pred_check
      _
    $region3: #{tpu_custom_call.1} parent=1 // pred_check_branch
      %21 = sbr.rel (0) target = $region5
    $region4: #{tpu_custom_call.1} parent=1 // pred_region
      _
    $region5: #{tpu_custom_call.1} parent=1 // pred_fallthru
      _
    // Predicated region
    $region6: #{tpu_custom_call.1} parent=1 // pred_check
      _
    $region7: #{tpu_custom_call.1} parent=1 // pred_check_branch
      %23 = sbr.rel (0) target = $region9
    $region8: #{tpu_custom_call.1} parent=1 // pred_region
      _
    $region9: #{tpu_custom_call.1} parent=1 // pred_fallthru
      _
    // Predicated region
    $region10: #{tpu_custom_call.1} parent=1 // pred_check
      _
    $region11: #{tpu_custom_call.1} parent=1 // pred_check_branch
      %25 = sbr.rel (0) target = $region13
    $region12: #{tpu_custom_call.1} parent=1 // pred_region
      _
    $region13: #{tpu_custom_call.1} parent=1 // pred_fallthru
      _
    // Predicated region
    $region14: #{tpu_custom_call.1} parent=1 // pred_check
      _
    $region15: #{tpu_custom_call.1} parent=1 // pred_check_branch
      %27 = sbr.rel (0) target = $region17
    $region16: #{tpu_custom_call.1} parent=1 // pred_region
      _
    $region17: #{tpu_custom_call.1} parent=1 // pred_fallthru
      _
    // Predicated region
    $region18: #{tpu_custom_call.1} parent=1 // pred_check
      _
    $region19: #{tpu_custom_call.1} parent=1 // pred_check_branch
      %29 = sbr.rel (0) target = $region21
    $region20: #{tpu_custom_call.1} parent=1 // pred_region
      %s31 = ssub.s32 1024, 1024
      %32 = vsyncadd [#allocation5], %s31
      %s33 = sshll.u32 [#allocation4], 4
      %s34 = int_to_ptr.vmem [resolvable:$true] %s33
      %39 = dma.hbm_to_vmem [thread:$0]  %s4, 1024, %s34, [#allocation5], 64, 64, 4
    $region21: #{tpu_custom_call.1} parent=1 // pred_fallthru
      _
    // Predicated region
    $region22: #{tpu_custom_call.1} parent=1 // pred_check
      _
    $region23: #{tpu_custom_call.1} parent=1 // pred_check_branch
      %41 = sbr.rel (0) target = $region25
    $region24: #{tpu_custom_call.1} parent=1 // pred_region
      _
    $region25: #{tpu_custom_call.1} parent=1 // pred_fallthru
      _
    // Predicated region
    $region26: #{tpu_custom_call.1} parent=1 // pred_check
      _
    $region27: #{tpu_custom_call.1} parent=1 // pred_check_branch
      %43 = sbr.rel (0) target = $region29
    $region28: #{tpu_custom_call.1} parent=1 // pred_region
      %s45 = ssub.s32 1024, 1024
      %46 = vsyncadd [#allocation7], %s45
      %s47 = sshll.u32 [#allocation6], 4
      %s48 = int_to_ptr.vmem [resolvable:$true] %s47
      %53 = dma.hbm_to_vmem [thread:$0]  %s6, 1024, %s48, [#allocation7], 64, 64, 4
    $region29: #{tpu_custom_call.1} parent=1 // pred_fallthru
      _
    // Predicated region
    $region30: #{tpu_custom_call.1} parent=1 // pred_check
      _
    $region31: #{tpu_custom_call.1} parent=1 // pred_check_branch
      %55 = sbr.rel (0) target = $region33
    $region32: #{tpu_custom_call.1} parent=1 // pred_region
      _
    $region33: #{tpu_custom_call.1} parent=1 // pred_fallthru
      _
    // Predicated region
    $region34: #{tpu_custom_call.1} parent=1 // pred_check
      _
    $region35: #{tpu_custom_call.1} parent=1 // pred_check_branch
      %57 = sbr.rel (0) target = $region37
    $region36: #{tpu_custom_call.1} parent=1 // pred_region
      _
    $region37: #{tpu_custom_call.1} parent=1 // pred_fallthru
      _
    // Predicated region
    $region38: #{tpu_custom_call.1} parent=1 // pred_check
      _
    $region39: #{tpu_custom_call.1} parent=1 // pred_check_branch
      %59 = sbr.rel (0) target = $region41
    $region40: #{tpu_custom_call.1} parent=1 // pred_region
      _
    $region41: #{tpu_custom_call.1} parent=1 // pred_fallthru
      _
    // Predicated region
    $region42: #{tpu_custom_call.1} parent=1 // pred_check
      _
    $region43: #{tpu_custom_call.1} parent=1 // pred_check_branch
      %61 = sbr.rel (0) target = $region45
    $region44: #{tpu_custom_call.1} parent=1 // pred_region
      %62 = dma.done [#allocation5], 1024
    $region45: #{tpu_custom_call.1} parent=1 // pred_fallthru
      _
    // Predicated region
    $region46: #{tpu_custom_call.1} parent=1 // pred_check
      _
    $region47: #{tpu_custom_call.1} parent=1 // pred_check_branch
      %64 = sbr.rel (0) target = $region49
    $region48: #{tpu_custom_call.1} parent=1 // pred_region
      %65 = dma.done [#allocation7], 1024
    $region49: #{tpu_custom_call.1} parent=1 // pred_fallthru
      _
    %v67 = vlaneseq
    %v68 = vshrl.u32 %v67, 7
    %v69 = vlaneseq
    %v70 = vand.u32 %v69, 127
    %s71 = smul.u32 0, 8
    %v72 = vstv %s71
    %v73 = vadd.s32 %v72, %v68
    %v74 = vmul.u32 %v73, 128
    %v75 = vadd.s32 %v74, %v70
    %s76 = sld [smem:[#allocation2]]
    %v77 = vld [vmem:[%s1] sm:$0xff]
    %v78 = vld [vmem:[%s2] sm:$0x1]
    %80 = vset.pattern.permute.xlu0 0
    %81 = vperm.xlu0 %80, %v77
    %v82 = vpop.permute.xlu0 %81
    %v84 = vlaneseq
    %v85 = vshrl.u32 %v84, 7
    %v86 = vsub.s32 0, %v85
    %v87 = vrot.slane %v78, %v86
    %v88 = vmul.f32 %v82, %v87
    %v89 = vld [vmem:[%s2 + $0x1] sm:$0x1]
    %90 = vset.pattern.permute.xlu0 1
    %91 = vperm.xlu0 %90, %v77
    %v92 = vpop.permute.xlu0 %91
    %v94 = vlaneseq
    %v95 = vshrl.u32 %v94, 7
    %v96 = vsub.s32 0, %v95
    %v97 = vrot.slane %v89, %v96
    %v98 = vmul.f32 %v92, %v97
    %v99 = vadd.f32 %v88, %v98
    %v100 = vld [vmem:[%s3] sm:$0x1]
    %v102 = vlaneseq
    %v103 = vshrl.u32 %v102, 7
    %v104 = vsub.s32 0, %v103
    %v105 = vrot.slane %v100, %v104
    %v107 = vadd.f32 %v99, %v105
    %v108 = vtanh.pop %v107
    %s109 = smul.u32 %s76, 2654435769
    %s110 = sadd.s32 %s109, 2135587861
    %v111 = vmul.u32 %v75, 2654435761
    %v112 = vstv %s110
    %v113 = vadd.s32 %v111, %v112
    %v114 = vshrl.u32 %v113, 16
    %v115 = vxor.u32 %v113, %v114
    %v116 = vmul.u32 %v115, 2246822507
    %v117 = vshrl.u32 %v116, 13
    %v118 = vxor.u32 %v116, %v117
    %v119 = vmul.u32 %v118, 3266489909
    %v120 = vshrl.u32 %v119, 16
    %v121 = vxor.u32 %v119, %v120
    %v122 = vshrl.u32 %v121, 8
    %vm123 = vcmp.ge.s32.totalorder %v122, 167772
    %v124 = vsel %vm123, %v108, 0.0
    %v125 = vpack.c.bf16 %v124, %v124
    %v126 = vld [vmem:[#allocation4] sm:$0xf]
    %v127 = vld [vmem:[#allocation4 + $0x4] sm:$0xf]
    %v128 = vld [vmem:[#allocation4 + $0x8] sm:$0xf]
    %v129 = vld [vmem:[#allocation4 + $0xc] sm:$0xf]
    %v130 = vld [vmem:[#allocation4 + $0x10] sm:$0xf]
    %v131 = vld [vmem:[#allocation4 + $0x14] sm:$0xf]
    %v132 = vld [vmem:[#allocation4 + $0x18] sm:$0xf]
    %v133 = vld [vmem:[#allocation4 + $0x1c] sm:$0xf]
    %v134 = vld [vmem:[#allocation4 + $0x20] sm:$0xf]
    %v135 = vld [vmem:[#allocation4 + $0x24] sm:$0xf]
    %v136 = vld [vmem:[#allocation4 + $0x28] sm:$0xf]
    %v137 = vld [vmem:[#allocation4 + $0x2c] sm:$0xf]
    %v138 = vld [vmem:[#allocation4 + $0x30] sm:$0xf]
    %v139 = vld [vmem:[#allocation4 + $0x34] sm:$0xf]
    %v140 = vld [vmem:[#allocation4 + $0x38] sm:$0xf]
    %v141 = vld [vmem:[#allocation4 + $0x3c] sm:$0xf]
    %v142 = vld [vmem:[%s5] sm:$0x1]
    %v144 = vlaneseq
    %v145 = vshrl.u32 %v144, 7
    %v146 = vsub.s32 0, %v145
    %v147 = vrot.slane %v142, %v146
    %v165 = vunpack.c.l.b16 %v126
    %v166 = vunpack.c.l.b16 %v127
    %v167 = vunpack.c.l.b16 %v128
    %v168 = vunpack.c.l.b16 %v129
    %v169 = vunpack.c.l.b16 %v130
    %v170 = vunpack.c.l.b16 %v131
    %v171 = vunpack.c.l.b16 %v132
    %v172 = vunpack.c.l.b16 %v133
    %v173 = vunpack.c.l.b16 %v134
    %v174 = vunpack.c.l.b16 %v135
    %v175 = vunpack.c.l.b16 %v136
    %v176 = vunpack.c.l.b16 %v137
    %v177 = vunpack.c.l.b16 %v138
    %v178 = vunpack.c.l.b16 %v139
    %v179 = vunpack.c.l.b16 %v140
    %v180 = vunpack.c.l.b16 %v141
    %v181 = vpack.c.b16 %v166, %v165
    %v182 = vpack.c.b16 %v168, %v167
    %v183 = vpack.c.b16 %v170, %v169
    %v184 = vpack.c.b16 %v172, %v171
    %v185 = vpack.c.b16 %v174, %v173
    %v186 = vpack.c.b16 %v176, %v175
    %v187 = vpack.c.b16 %v178, %v177
    %v188 = vpack.c.b16 %v180, %v179
    %197 = vmatprep.subr.bf16.mxu0 0
    %198 = vmatpush1.bf16.msra.mxu0 %v188
    %199 = vmatprep.subr.bf16.mxu0 0
    %200 = vmatpush1.bf16.msra.mxu0 %v187
    %201 = vmatprep.subr.bf16.mxu0 0
    %202 = vmatpush1.bf16.msra.mxu0 %v186
    %203 = vmatprep.subr.bf16.mxu0 0
    %204 = vmatpush1.bf16.msra.mxu0 %v185
    %205 = vmatprep.subr.bf16.mxu0 0
    %206 = vmatpush1.bf16.msra.mxu0 %v184
    %207 = vmatprep.subr.bf16.mxu0 0
    %208 = vmatpush1.bf16.msra.mxu0 %v183
    %209 = vmatprep.subr.bf16.mxu0 0
    %210 = vmatpush1.bf16.msra.mxu0 %v182
    %211 = vmatprep.subr.bf16.mxu0 0
    %212 = vmatpush1.bf16.msra.mxu0 %v181
    %213 = vmatprep.subr.bf16.mxu0 0
    %214 = vmatpush2.bf16.msra.mxu0 0
    %215 = vmatprep.subr.bf16.mxu0 0
    %216 = vmatpush2.bf16.msra.mxu0 0
    %217 = vmatprep.subr.bf16.mxu0 0
    %218 = vmatpush2.bf16.msra.mxu0 0
    %219 = vmatprep.subr.bf16.mxu0 0
    %220 = vmatpush2.bf16.msra.mxu0 0
    %221 = vmatprep.subr.bf16.mxu0 0
    %222 = vmatpush2.bf16.msra.mxu0 0
    %223 = vmatprep.subr.bf16.mxu0 0
    %224 = vmatpush2.bf16.msra.mxu0 0
    %225 = vmatprep.subr.bf16.mxu0 0
    %226 = vmatpush2.bf16.msra.mxu0 0
    %227 = vmatprep.subr.bf16.mxu0 0
    %228 = vmatpush2.bf16.msra.mxu0 0
    %229 = vmatprep.mubr.bf16.mxu0 0
    %230 = vmatmul.mubr.bf16.gmra.mxu0 %v125
    %v231 = vpop.f32.mrf.mxu0
    %v232 = vadd.f32 %v147, %v231
    %v233 = vpop.f32.mrf.mxu0
    %v234 = vpop.f32.mrf.mxu0
    %v235 = vpop.f32.mrf.mxu0
    %236 = vdwg.mxu0
    %v237 = vtanh.pop %v232
    %s238 = sadd.s32 %s109, 4271175722
    %v239 = vstv %s238
    %v240 = vadd.s32 %v111, %v239
    %v241 = vshrl.u32 %v240, 16
    %v242 = vxor.u32 %v240, %v241
    %v243 = vmul.u32 %v242, 2246822507
    %v244 = vshrl.u32 %v243, 13
    %v245 = vxor.u32 %v243, %v244
    %v246 = vmul.u32 %v245, 3266489909
    %v247 = vshrl.u32 %v246, 16
    %v248 = vxor.u32 %v246, %v247
    %v249 = vshrl.u32 %v248, 8
    %vm250 = vcmp.ge.s32.totalorder %v249, 167772
    %v251 = vsel %vm250, %v237, 0.0
    %v252 = vpack.c.bf16 %v251, %v251
    %v253 = vld [vmem:[#allocation6] sm:$0xf]
    %v254 = vld [vmem:[#allocation6 + $0x4] sm:$0xf]
    %v255 = vld [vmem:[#allocation6 + $0x8] sm:$0xf]
    %v256 = vld [vmem:[#allocation6 + $0xc] sm:$0xf]
    %v257 = vld [vmem:[#allocation6 + $0x10] sm:$0xf]
    %v258 = vld [vmem:[#allocation6 + $0x14] sm:$0xf]
    %v259 = vld [vmem:[#allocation6 + $0x18] sm:$0xf]
    %v260 = vld [vmem:[#allocation6 + $0x1c] sm:$0xf]
    %v261 = vld [vmem:[#allocation6 + $0x20] sm:$0xf]
    %v262 = vld [vmem:[#allocation6 + $0x24] sm:$0xf]
    %v263 = vld [vmem:[#allocation6 + $0x28] sm:$0xf]
    %v264 = vld [vmem:[#allocation6 + $0x2c] sm:$0xf]
    %v265 = vld [vmem:[#allocation6 + $0x30] sm:$0xf]
    %v266 = vld [vmem:[#allocation6 + $0x34] sm:$0xf]
    %v267 = vld [vmem:[#allocation6 + $0x38] sm:$0xf]
    %v268 = vld [vmem:[#allocation6 + $0x3c] sm:$0xf]
    %v269 = vld [vmem:[%s7] sm:$0x1]
    %v271 = vlaneseq
    %v272 = vshrl.u32 %v271, 7
    %v273 = vsub.s32 0, %v272
    %v274 = vrot.slane %v269, %v273
    %v292 = vunpack.c.l.b16 %v253
    %v293 = vunpack.c.l.b16 %v254
    %v294 = vunpack.c.l.b16 %v255
    %v295 = vunpack.c.l.b16 %v256
    %v296 = vunpack.c.l.b16 %v257
    %v297 = vunpack.c.l.b16 %v258
    %v298 = vunpack.c.l.b16 %v259
    %v299 = vunpack.c.l.b16 %v260
    %v300 = vunpack.c.l.b16 %v261
    %v301 = vunpack.c.l.b16 %v262
    %v302 = vunpack.c.l.b16 %v263
    %v303 = vunpack.c.l.b16 %v264
    %v304 = vunpack.c.l.b16 %v265
    %v305 = vunpack.c.l.b16 %v266
    %v306 = vunpack.c.l.b16 %v267
    %v307 = vunpack.c.l.b16 %v268
    %v308 = vpack.c.b16 %v293, %v292
    %v309 = vpack.c.b16 %v295, %v294
    %v310 = vpack.c.b16 %v297, %v296
    %v311 = vpack.c.b16 %v299, %v298
    %v312 = vpack.c.b16 %v301, %v300
    %v313 = vpack.c.b16 %v303, %v302
    %v314 = vpack.c.b16 %v305, %v304
    %v315 = vpack.c.b16 %v307, %v306
    %324 = vmatprep.subr.bf16.mxu0 0
    %325 = vmatpush1.bf16.msra.mxu0 %v315
    %326 = vmatprep.subr.bf16.mxu0 0
    %327 = vmatpush1.bf16.msra.mxu0 %v314
    %328 = vmatprep.subr.bf16.mxu0 0
    %329 = vmatpush1.bf16.msra.mxu0 %v313
    %330 = vmatprep.subr.bf16.mxu0 0
    %331 = vmatpush1.bf16.msra.mxu0 %v312
    %332 = vmatprep.subr.bf16.mxu0 0
    %333 = vmatpush1.bf16.msra.mxu0 %v311
    %334 = vmatprep.subr.bf16.mxu0 0
    %335 = vmatpush1.bf16.msra.mxu0 %v310
    %336 = vmatprep.subr.bf16.mxu0 0
    %337 = vmatpush1.bf16.msra.mxu0 %v309
    %338 = vmatprep.subr.bf16.mxu0 0
    %339 = vmatpush1.bf16.msra.mxu0 %v308
    %340 = vmatprep.subr.bf16.mxu0 0
    %341 = vmatpush2.bf16.msra.mxu0 0
    %342 = vmatprep.subr.bf16.mxu0 0
    %343 = vmatpush2.bf16.msra.mxu0 0
    %344 = vmatprep.subr.bf16.mxu0 0
    %345 = vmatpush2.bf16.msra.mxu0 0
    %346 = vmatprep.subr.bf16.mxu0 0
    %347 = vmatpush2.bf16.msra.mxu0 0
    %348 = vmatprep.subr.bf16.mxu0 0
    %349 = vmatpush2.bf16.msra.mxu0 0
    %350 = vmatprep.subr.bf16.mxu0 0
    %351 = vmatpush2.bf16.msra.mxu0 0
    %352 = vmatprep.subr.bf16.mxu0 0
    %353 = vmatpush2.bf16.msra.mxu0 0
    %354 = vmatprep.subr.bf16.mxu0 0
    %355 = vmatpush2.bf16.msra.mxu0 0
    %356 = vmatprep.mubr.bf16.mxu0 0
    %357 = vmatmul.mubr.bf16.gmra.mxu0 %v252
    %v358 = vpop.f32.mrf.mxu0
    %v359 = vadd.f32 %v274, %v358
    %v360 = vpop.f32.mrf.mxu0
    %v361 = vpop.f32.mrf.mxu0
    %v362 = vpop.f32.mrf.mxu0
    %363 = vdwg.mxu0
    %v364 = vtanh.pop %v359
    %s365 = sadd.s32 %s109, 2111796287
    %v366 = vstv %s365
    %v367 = vadd.s32 %v111, %v366
    %v368 = vshrl.u32 %v367, 16
    %v369 = vxor.u32 %v367, %v368
    %v370 = vmul.u32 %v369, 2246822507
    %v371 = vshrl.u32 %v370, 13
    %v372 = vxor.u32 %v370, %v371
    %v373 = vmul.u32 %v372, 3266489909
    %v374 = vshrl.u32 %v373, 16
    %v375 = vxor.u32 %v373, %v374
    %v376 = vshrl.u32 %v375, 8
    %vm377 = vcmp.ge.s32.totalorder %v376, 167772
    %v378 = vsel %vm377, %v364, 0.0
    %v379 = vld [vmem:[%s8] sm:$0x1]
    %v381 = vlaneseq
    %v382 = vshrl.u32 %v381, 7
    %v383 = vsub.s32 0, %v382
    %v384 = vrot.slane %v379, %v383
    %v386 = vmul.f32 %v378, %v384
    %387 = vadd.xlane.f32.xlu0 %v386
    %v388 = vpop.xlane.xlu0 %387
    %v389 = vld [vmem:[#allocation3] sm:$0x1]
    %v391 = vlaneseq
    %v392 = vshrl.u32 %v391, 7
    %v393 = vsub.s32 0, %v392
    %v394 = vrot.slane %v389, %v393
    %v396 = vadd.f32 %v388, %v394
    %vm397 = vcmask 7168
    %398 = vst.msk [vmem:[%s10] sm:$0xff] %vm397, %v396
    // Predicated region
    $region50: #{tpu_custom_call.1} parent=1 // pred_check
      _
    $region51: #{tpu_custom_call.1} parent=1 // pred_check_branch
      %400 = sbr.rel (0) target = $region53
    $region52: #{tpu_custom_call.1} parent=1 // pred_region
      _
    $region53: #{tpu_custom_call.1} parent=1 // pred_fallthru
      _
    // Predicated region
    $region54: #{tpu_custom_call.1} parent=1 // pred_check
      _
    $region55: #{tpu_custom_call.1} parent=1 // pred_check_branch
      %402 = sbr.rel (0) target = $region57
    $region56: #{tpu_custom_call.1} parent=1 // pred_region
      _
    $region57: #{tpu_custom_call.1} parent=1 // pred_fallthru
      _
    %403 = vsyncpa [#allocation5], 1
    %404 = vsyncpa [#allocation7], 1

</llo_original>
